<compile_context>
chip_gen: v7x
topology: tpu7x:2x2x1
jax: 0.10.0
libtpu: 0.0.40
codegen_flags: <defaults>
</compile_context>

<pallas_src>
import functools

import jax
import jax.numpy as jnp
from jax.experimental import pallas as pl
from jax.experimental.pallas import tpu as pltpu


def _mlp_kernel(x_ref, w1_ref, b1_ref, w2_ref, b2_ref, w3_ref, b3_ref,
                w4_ref, b4_ref, o_ref):
    """Fused transposed MLP for one lane-dense batch tile.

    x_ref : (1, TB) f32          o_ref : (out_dim, TB) f32
    w1 (N,1) b1 (N,1)  w2 (N,N) b2 (N,1)  w3 (N,N) b3 (N,1)  w4 (out,N) b4 (out,1)
    Hidden matmul weights may be pre-cast to bf16 by the wrapper; accumulation
    is always f32 via preferred_element_type.
    """
    cdt = w2_ref.dtype                       # compute dtype of hidden matmuls
    x = x_ref[...]                           # (1, TB) f32

    # Layer 1: in_dim == 1 -> VPU broadcast multiply (no degenerate K=1 MXU op).
    z1 = w1_ref[...] * x + b1_ref[...]       # (N,1)*(1,TB)+(N,1) -> (N,TB) f32
    a1 = jnp.tanh(z1).astype(cdt)

    z2 = jnp.dot(w2_ref[...], a1, preferred_element_type=jnp.float32) + b2_ref[...]
    a2 = jnp.tanh(z2).astype(cdt)

    z3 = jnp.dot(w3_ref[...], a2, preferred_element_type=jnp.float32) + b3_ref[...]
    a3 = jnp.tanh(z3).astype(cdt)

    z4 = jnp.dot(w4_ref[...], a3, preferred_element_type=jnp.float32) + b4_ref[...]
    o_ref[...] = z4.astype(o_ref.dtype)      # (out_dim, TB)


# Largest batch tile (lanes) per grid step.  Footprint per step is roughly
#   (x 2x4B + out 2x24B + ~4 live (N,TB) f32 activations ~512B) * TB  ~ 9 MiB
# at TB=16384 with N=32 — safely inside v5e's 16 MiB scoped default and far
# inside v6e/v7x's 32 MiB scoped / 64 MiB physical budgets.
_TB_CAP = 16384
_LANE = 128


def _round_up(n, m):
    return ((n + m - 1) // m) * m


def pinn_forward(x, params, *, batch_tile=None, compute_dtype=jnp.float32):
    """Run the PINeuralNet forward pass with a fused Pallas TPU kernel.

    x:      (B, 1) float32  (B may be ragged; padded to a lane-tile multiple)
    params: dict with PyTorch-layout weights:
            w1 (N,1), b1 (N,1), w2 (N,N), b2 (N,1),
            w3 (N,N), b3 (N,1), w4 (6,N), b4 (6,1)
    compute_dtype: jnp.float32 (default, always safe) or jnp.bfloat16
            (hidden matmul operands only; accumulation stays f32).
    Returns (B, 6) float32, matching the PyTorch module.
    """
    B, in_dim = x.shape
    assert in_dim == 1
    N = params["w1"].shape[0]
    out_dim = params["w4"].shape[0]

    if batch_tile is None:
        # Largest lane-dense tile that fits the VMEM budget; grid=1 for small
        # batches (no artificial >=2-step split — grid steps are a serial loop
        # per TensorCore and each step costs ~600 cycles of fixed overhead).
        tb = min(_TB_CAP, _round_up(B, _LANE))
    else:
        tb = batch_tile
    assert tb % _LANE == 0, "batch_tile must be a multiple of 128 (lane constraint)"

    grid = pl.cdiv(B, tb)
    b_pad = grid * tb

    # Batch onto the lane axis: (B,1) -> (1,B), pad ragged batches on lanes.
    x_t = x.reshape(1, B)
    if b_pad != B:
        x_t = jnp.pad(x_t, ((0, 0), (0, b_pad - B)))

    # bf16 path: pre-cast hidden matmul weights ONCE in the wrapper (avoids
    # per-grid-step casts and halves resident weight VMEM / weight DMA).
    if compute_dtype == jnp.bfloat16:
        w2 = params["w2"].astype(jnp.bfloat16)
        w3 = params["w3"].astype(jnp.bfloat16)
        w4 = params["w4"].astype(jnp.bfloat16)
    else:
        w2, w3, w4 = params["w2"], params["w3"], params["w4"]

    full = lambda shape: pl.BlockSpec(shape, lambda i: (0,) * len(shape))

    grid_spec = pltpu.PrefetchScalarGridSpec(
        num_scalar_prefetch=0,
        grid=(grid,),
        in_specs=[
            pl.BlockSpec((1, tb), lambda i: (0, i)),       # x: lane-dense batch tile
            full((N, in_dim)), full((N, 1)),               # w1, b1 (f32)
            full((N, N)),      full((N, 1)),               # w2, b2
            full((N, N)),      full((N, 1)),               # w3, b3
            full((out_dim, N)), full((out_dim, 1)),        # w4, b4
        ],
        out_specs=pl.BlockSpec((out_dim, tb), lambda i: (0, i)),
    )

    weight_bytes = sum(int(v.size) * v.dtype.itemsize
                       for v in (params["w1"], params["b1"], w2, params["b2"],
                                 w3, params["b3"], w4, params["b4"]))
    cost = pl.CostEstimate(
        flops=2 * b_pad * (2 * N * N + N * (in_dim + out_dim)),
        transcendentals=3 * b_pad * N,
        bytes_accessed=b_pad * 4 * (in_dim + out_dim) + weight_bytes,
    )

    out_t = pl.pallas_call(
        _mlp_kernel,
        out_shape=jax.ShapeDtypeStruct((out_dim, b_pad), jnp.float32),
        grid_spec=grid_spec,
        compiler_params=pltpu.CompilerParams(
            dimension_semantics=("parallel",),
            vmem_limit_bytes=32 * 1024 * 1024,   # < v7x 64 MiB physical, ample on v5e/v6e
        ),
        cost_estimate=cost,
    )(
        x_t,
        params["w1"], params["b1"],
        w2, params["b2"],
        w3, params["b3"],
        w4, params["b4"],
    )
    # (out_dim, b_pad) -> (B, out_dim); slice drops padded (discarded) columns.
    return out_t[:, :B].T


def init_params(key, neurons, out_dim=6):
    """Deterministic init mirroring nn.Linear (uniform(-1/sqrt(fan_in), +1/sqrt(fan_in))).

    Weights kept in PyTorch (out_features, in_features) layout; biases as
    (out_features, 1) so they broadcast along the lane (batch) axis in-kernel.
    """
    def linear(key, fan_in, fan_out):
        kw, kb = jax.random.split(key)
        bound = 1.0 / jnp.sqrt(jnp.float32(fan_in))
        w = jax.random.uniform(kw, (fan_out, fan_in), jnp.float32, -bound, bound)
        b = jax.random.uniform(kb, (fan_out, 1), jnp.float32, -bound, bound)
        return w, b

    k1, k2, k3, k4 = jax.random.split(key, 4)
    w1, b1 = linear(k1, 1, neurons)
    w2, b2 = linear(k2, neurons, neurons)
    w3, b3 = linear(k3, neurons, neurons)
    w4, b4 = linear(k4, neurons, out_dim)
    return {"w1": w1, "b1": b1, "w2": w2, "b2": b2,
            "w3": w3, "b3": b3, "w4": w4, "b4": b4}
    # TODO(synk): E1..E6, A1..A6, e, c1, c2 are physics parameters held by the
    # module but unused in forward(), so they are not part of the kernel.


def reference_forward(x, p):
    a1 = jnp.tanh(x @ p["w1"].T + p["b1"].T)
    a2 = jnp.tanh(a1 @ p["w2"].T + p["b2"].T)
    a3 = jnp.tanh(a2 @ p["w3"].T + p["b3"].T)
    return a3 @ p["w4"].T + p["b4"].T


if __name__ == "__main__":
    key = jax.random.PRNGKey(0)
    k_params, k_x = jax.random.split(key)

    neurons = 32
    batch = 256          # one lane-dense 256-wide tile, grid=1
    params = init_params(k_params, neurons)
    x = jax.random.uniform(k_x, (batch, 1), jnp.float32)   # time coordinate

    # f32 path (default).
    out = jax.block_until_ready(pinn_forward(x, params))
    ref = reference_forward(x, params)
    assert out.shape == (batch, 6)
    assert jnp.allclose(out, ref, atol=1e-5, rtol=1e-5), "f32 mismatch vs reference"

    # Ragged batch exercises the pad-and-slice path (pads to 384 lanes).
    xr = jax.random.uniform(k_x, (batch + 45, 1), jnp.float32)
    out_r = jax.block_until_ready(pinn_forward(xr, params))
    assert out_r.shape == (batch + 45, 6)
    assert jnp.allclose(out_r, reference_forward(xr, params), atol=1e-5, rtol=1e-5), \
        "ragged-batch mismatch vs reference"

    # Explicit multi-step grid (2 x 128-lane tiles) still matches.
    out_g = jax.block_until_ready(pinn_forward(x, params, batch_tile=128))
    assert jnp.allclose(out_g, ref, atol=1e-5, rtol=1e-5), "tiled-grid mismatch"

    # Optional bf16 compute path (pre-cast weights); f32 accumulation,
    # looser tolerance is expected (not a bug) — keep f32 for PINN training.
    out_bf16 = jax.block_until_ready(
        pinn_forward(x, params, compute_dtype=jnp.bfloat16))
    assert out_bf16.shape == (batch, 6)
    assert jnp.allclose(out_bf16, ref, atol=5e-2, rtol=5e-2), "bf16 path mismatch"

    print("KERNEL_OK")
</pallas_src>

<mosaic_0001>
module attributes {stable_mosaic.version = 11 : i64} {
  func.func @_mlp_kernel(%arg0: i32, %arg1: memref<1x256xf32, #tpu.memory_space<vmem>>, %arg2: memref<32x1xf32, #tpu.memory_space<vmem>>, %arg3: memref<32x1xf32, #tpu.memory_space<vmem>>, %arg4: memref<32x32xf32, #tpu.memory_space<vmem>>, %arg5: memref<32x1xf32, #tpu.memory_space<vmem>>, %arg6: memref<32x32xf32, #tpu.memory_space<vmem>>, %arg7: memref<32x1xf32, #tpu.memory_space<vmem>>, %arg8: memref<6x32xf32, #tpu.memory_space<vmem>>, %arg9: memref<6x1xf32, #tpu.memory_space<vmem>>, %arg10: memref<6x256xf32, #tpu.memory_space<vmem>>) attributes {dimension_semantics = [#tpu.dimension_semantics<parallel>], iteration_bounds = array<i64: 1>, scalar_prefetch = 0 : i64, scratch_operands = 0 : i64, tpu.core_type = #tpu.core_type<tc>, window_params = [{transform_indices = @transform_0, window_bounds = array<i64: 1, 256>}, {pipeline_mode = #tpu.pipeline_mode<synchronous>, transform_indices = @transform_1, window_bounds = array<i64: 32, 1>}, {pipeline_mode = #tpu.pipeline_mode<synchronous>, transform_indices = @transform_2, window_bounds = array<i64: 32, 1>}, {pipeline_mode = #tpu.pipeline_mode<synchronous>, transform_indices = @transform_3, window_bounds = array<i64: 32, 32>}, {pipeline_mode = #tpu.pipeline_mode<synchronous>, transform_indices = @transform_4, window_bounds = array<i64: 32, 1>}, {pipeline_mode = #tpu.pipeline_mode<synchronous>, transform_indices = @transform_5, window_bounds = array<i64: 32, 32>}, {pipeline_mode = #tpu.pipeline_mode<synchronous>, transform_indices = @transform_6, window_bounds = array<i64: 32, 1>}, {pipeline_mode = #tpu.pipeline_mode<synchronous>, transform_indices = @transform_7, window_bounds = array<i64: 6, 32>}, {pipeline_mode = #tpu.pipeline_mode<synchronous>, transform_indices = @transform_8, window_bounds = array<i64: 6, 1>}, {transform_indices = @transform_9, window_bounds = array<i64: 6, 256>}]} {
    %c0 = arith.constant 0 : index
    %c0_0 = arith.constant 0 : index
    %0 = vector.load %arg1[%c0, %c0_0] : memref<1x256xf32, #tpu.memory_space<vmem>>, vector<1x256xf32>
    %c0_1 = arith.constant 0 : index
    %c0_2 = arith.constant 0 : index
    %1 = vector.load %arg2[%c0_1, %c0_2] : memref<32x1xf32, #tpu.memory_space<vmem>>, vector<32x1xf32>
    %2 = vector.broadcast %1 : vector<32x1xf32> to vector<32x256xf32>
    %3 = vector.broadcast %0 : vector<1x256xf32> to vector<32x256xf32>
    %4 = arith.mulf %2, %3 : vector<32x256xf32>
    %c0_3 = arith.constant 0 : index
    %c0_4 = arith.constant 0 : index
    %5 = vector.load %arg3[%c0_3, %c0_4] : memref<32x1xf32, #tpu.memory_space<vmem>>, vector<32x1xf32>
    %6 = vector.broadcast %5 : vector<32x1xf32> to vector<32x256xf32>
    %7 = arith.addf %4, %6 : vector<32x256xf32>
    %8 = math.tanh %7 : vector<32x256xf32>
    %c0_5 = arith.constant 0 : index
    %c0_6 = arith.constant 0 : index
    %9 = vector.load %arg4[%c0_5, %c0_6] : memref<32x32xf32, #tpu.memory_space<vmem>>, vector<32x32xf32>
    %cst = arith.constant dense<0.000000e+00> : vector<32x256xf32>
    %10 = tpu.matmul %9, %8, %cst {dimension_numbers = #tpu.dot_dimension_numbers<[1], [0], [0], [1], [0, 0, 1, 1], [], []>} : vector<32x32xf32>, vector<32x256xf32>, vector<32x256xf32> -> vector<32x256xf32>
    %c0_7 = arith.constant 0 : index
    %c0_8 = arith.constant 0 : index
    %11 = vector.load %arg5[%c0_7, %c0_8] : memref<32x1xf32, #tpu.memory_space<vmem>>, vector<32x1xf32>
    %12 = vector.broadcast %11 : vector<32x1xf32> to vector<32x256xf32>
    %13 = arith.addf %10, %12 : vector<32x256xf32>
    %14 = math.tanh %13 : vector<32x256xf32>
    %c0_9 = arith.constant 0 : index
    %c0_10 = arith.constant 0 : index
    %15 = vector.load %arg6[%c0_9, %c0_10] : memref<32x32xf32, #tpu.memory_space<vmem>>, vector<32x32xf32>
    %cst_11 = arith.constant dense<0.000000e+00> : vector<32x256xf32>
    %16 = tpu.matmul %15, %14, %cst_11 {dimension_numbers = #tpu.dot_dimension_numbers<[1], [0], [0], [1], [0, 0, 1, 1], [], []>} : vector<32x32xf32>, vector<32x256xf32>, vector<32x256xf32> -> vector<32x256xf32>
    %c0_12 = arith.constant 0 : index
    %c0_13 = arith.constant 0 : index
    %17 = vector.load %arg7[%c0_12, %c0_13] : memref<32x1xf32, #tpu.memory_space<vmem>>, vector<32x1xf32>
    %18 = vector.broadcast %17 : vector<32x1xf32> to vector<32x256xf32>
    %19 = arith.addf %16, %18 : vector<32x256xf32>
    %20 = math.tanh %19 : vector<32x256xf32>
    %c0_14 = arith.constant 0 : index
    %c0_15 = arith.constant 0 : index
    %21 = vector.load %arg8[%c0_14, %c0_15] : memref<6x32xf32, #tpu.memory_space<vmem>>, vector<6x32xf32>
    %cst_16 = arith.constant dense<0.000000e+00> : vector<6x256xf32>
    %22 = tpu.matmul %21, %20, %cst_16 {dimension_numbers = #tpu.dot_dimension_numbers<[1], [0], [0], [1], [0, 0, 1, 1], [], []>} : vector<6x32xf32>, vector<32x256xf32>, vector<6x256xf32> -> vector<6x256xf32>
    %c0_17 = arith.constant 0 : index
    %c0_18 = arith.constant 0 : index
    %23 = vector.load %arg9[%c0_17, %c0_18] : memref<6x1xf32, #tpu.memory_space<vmem>>, vector<6x1xf32>
    %24 = vector.broadcast %23 : vector<6x1xf32> to vector<6x256xf32>
    %25 = arith.addf %22, %24 : vector<6x256xf32>
    %c0_19 = arith.constant 0 : index
    %c0_20 = arith.constant 0 : index
    %26 = vector.load %arg10[%c0_19, %c0_20] : memref<6x256xf32, #tpu.memory_space<vmem>>, vector<6x256xf32>
    tpu.vector_store %arg10[%c0_19, %c0_20], %25 {strides = array<i32>} : memref<6x256xf32, #tpu.memory_space<vmem>>, vector<6x256xf32>,
    return
  }
  func.func @transform_0(%arg0: i32) -> (i32, i32) {
    %c0_i32 = arith.constant 0 : i32
    %c0_i32_0 = arith.constant 0 : i32
    return %c0_i32, %arg0 : i32, i32
  }
  func.func @transform_1(%arg0: i32) -> (i32, i32) {
    %c0_i32 = arith.constant 0 : i32
    %c0_i32_0 = arith.constant 0 : i32
    %c0_i32_1 = arith.constant 0 : i32
    return %c0_i32, %c0_i32_0 : i32, i32
  }
  func.func @transform_2(%arg0: i32) -> (i32, i32) {
    %c0_i32 = arith.constant 0 : i32
    %c0_i32_0 = arith.constant 0 : i32
    %c0_i32_1 = arith.constant 0 : i32
    return %c0_i32, %c0_i32_0 : i32, i32
  }
  func.func @transform_3(%arg0: i32) -> (i32, i32) {
    %c0_i32 = arith.constant 0 : i32
    %c0_i32_0 = arith.constant 0 : i32
    %c0_i32_1 = arith.constant 0 : i32
    return %c0_i32, %c0_i32_0 : i32, i32
  }
  func.func @transform_4(%arg0: i32) -> (i32, i32) {
    %c0_i32 = arith.constant 0 : i32
    %c0_i32_0 = arith.constant 0 : i32
    %c0_i32_1 = arith.constant 0 : i32
    return %c0_i32, %c0_i32_0 : i32, i32
  }
  func.func @transform_5(%arg0: i32) -> (i32, i32) {
    %c0_i32 = arith.constant 0 : i32
    %c0_i32_0 = arith.constant 0 : i32
    %c0_i32_1 = arith.constant 0 : i32
    return %c0_i32, %c0_i32_0 : i32, i32
  }
  func.func @transform_6(%arg0: i32) -> (i32, i32) {
    %c0_i32 = arith.constant 0 : i32
    %c0_i32_0 = arith.constant 0 : i32
    %c0_i32_1 = arith.constant 0 : i32
    return %c0_i32, %c0_i32_0 : i32, i32
  }
  func.func @transform_7(%arg0: i32) -> (i32, i32) {
    %c0_i32 = arith.constant 0 : i32
    %c0_i32_0 = arith.constant 0 : i32
    %c0_i32_1 = arith.constant 0 : i32
    return %c0_i32, %c0_i32_0 : i32, i32
  }
  func.func @transform_8(%arg0: i32) -> (i32, i32) {
    %c0_i32 = arith.constant 0 : i32
    %c0_i32_0 = arith.constant 0 : i32
    %c0_i32_1 = arith.constant 0 : i32
    return %c0_i32, %c0_i32_0 : i32, i32
  }
  func.func @transform_9(%arg0: i32) -> (i32, i32) {
    %c0_i32 = arith.constant 0 : i32
    %c0_i32_0 = arith.constant 0 : i32
    return %c0_i32, %arg0 : i32, i32
  }
}

</mosaic_0001>

<llo_original>
// kernel: tpu_custom_call.1
$region0: #{tpu_custom_call.1}
  #allocation0 [shape = 'u32[]', space=smem, size = 0x4, offset = 0x4, fixed_abs, tag = 'smem constant byte address 0x4 - core index']
  #allocation1 [shape = 'u32[144,128]{1,0:T(1,128)}', space=vmem, size = 0x12000, scoped, tag = 'internal scratch']
  %s0 = inlined_call_operand.vmem [shape: f32[1,256], index: 0, kind: input, shape index: {}]
  %s1 = inlined_call_operand.vmem [shape: f32[32,1], index: 1, kind: input, shape index: {}]
  %s2 = inlined_call_operand.vmem [shape: f32[32,1], index: 2, kind: input, shape index: {}]
  %s3 = inlined_call_operand.vmem [shape: f32[32,32], index: 3, kind: input, shape index: {}]
  %s4 = inlined_call_operand.vmem [shape: f32[32,1], index: 4, kind: input, shape index: {}]
  %s5 = inlined_call_operand.vmem [shape: f32[32,32], index: 5, kind: input, shape index: {}]
  %s6 = inlined_call_operand.vmem [shape: f32[32,1], index: 6, kind: input, shape index: {}]
  %s7 = inlined_call_operand.vmem [shape: f32[6,32], index: 7, kind: input, shape index: {}]
  %s8 = inlined_call_operand.vmem [shape: f32[6,1], index: 8, kind: input, shape index: {}]
  %s9 = inlined_call_operand.hbm [shape: f32[6,256], index: 9, kind: output, shape index: {}]
  %s10 = sld [smem:[#allocation0]]
  $region46: #{tpu_custom_call.1} parent=0
    _
  %s12 = ssub.s32 1, %s10
  %s13 = scalar_select 0, %s12, %s10
  $region1: #{tpu_custom_call.1} parent=0
    #allocation2 [shape = 'u8[8192]{0}', space=vmem, size = 0x2000, scoped, tag = 'output window, operand 0, single buffered']
    #allocation3 [shape = 's32[1]{0}', space=sflag, size = 0x4, scoped, tag = 'scoped memory for tpu_custom_call.1']
    %14 = vsyncpa [#allocation3], 0
    // Predicated region
    $region2: #{tpu_custom_call.1} parent=1 // pred_check
      _
    $region3: #{tpu_custom_call.1} parent=1 // pred_check_branch
      %16 = sbr.rel (0) target = $region5
    $region4: #{tpu_custom_call.1} parent=1 // pred_region
      _
    $region5: #{tpu_custom_call.1} parent=1 // pred_fallthru
      _
    // Predicated region
    $region6: #{tpu_custom_call.1} parent=1 // pred_check
      _
    $region7: #{tpu_custom_call.1} parent=1 // pred_check_branch
      %18 = sbr.rel (0) target = $region9
    $region8: #{tpu_custom_call.1} parent=1 // pred_region
      _
    $region9: #{tpu_custom_call.1} parent=1 // pred_fallthru
      _
    // Predicated region
    $region10: #{tpu_custom_call.1} parent=1 // pred_check
      _
    $region11: #{tpu_custom_call.1} parent=1 // pred_check_branch
      %20 = sbr.rel (0) target = $region13
    $region12: #{tpu_custom_call.1} parent=1 // pred_region
      _
    $region13: #{tpu_custom_call.1} parent=1 // pred_fallthru
      _
    // Predicated region
    $region14: #{tpu_custom_call.1} parent=1 // pred_check
      _
    $region15: #{tpu_custom_call.1} parent=1 // pred_check_branch
      %22 = sbr.rel (0) target = $region17
    $region16: #{tpu_custom_call.1} parent=1 // pred_region
      _
    $region17: #{tpu_custom_call.1} parent=1 // pred_fallthru
      _
    // Predicated region
    $region18: #{tpu_custom_call.1} parent=1 // pred_check
      _
    $region19: #{tpu_custom_call.1} parent=1 // pred_check_branch
      %24 = sbr.rel (0) target = $region21
    $region20: #{tpu_custom_call.1} parent=1 // pred_region
      _
    $region21: #{tpu_custom_call.1} parent=1 // pred_fallthru
      _
    // Predicated region
    $region22: #{tpu_custom_call.1} parent=1 // pred_check
      _
    $region23: #{tpu_custom_call.1} parent=1 // pred_check_branch
      %26 = sbr.rel (0) target = $region25
    $region24: #{tpu_custom_call.1} parent=1 // pred_region
      _
    $region25: #{tpu_custom_call.1} parent=1 // pred_fallthru
      _
    // Predicated region
    $region26: #{tpu_custom_call.1} parent=1 // pred_check
      _
    $region27: #{tpu_custom_call.1} parent=1 // pred_check_branch
      %28 = sbr.rel (0) target = $region29
    $region28: #{tpu_custom_call.1} parent=1 // pred_region
      _
    $region29: #{tpu_custom_call.1} parent=1 // pred_fallthru
      _
    // Predicated region
    $region30: #{tpu_custom_call.1} parent=1 // pred_check
      _
    $region31: #{tpu_custom_call.1} parent=1 // pred_check_branch
      %30 = sbr.rel (0) target = $region33
    $region32: #{tpu_custom_call.1} parent=1 // pred_region
      _
    $region33: #{tpu_custom_call.1} parent=1 // pred_fallthru
      _
    // Predicated region
    $region34: #{tpu_custom_call.1} parent=1 // pred_check
      _
    $region35: #{tpu_custom_call.1} parent=1 // pred_check_branch
      %32 = sbr.rel (0) target = $region37
    $region36: #{tpu_custom_call.1} parent=1 // pred_region
      _
    $region37: #{tpu_custom_call.1} parent=1 // pred_fallthru
      _
    %v33 = vld [vmem:[%s0] sm:$0x3]
    %v34 = vld [vmem:[%s1] sm:$0xff]
    %v35 = vld [vmem:[%s1 + $0x8] sm:$0xff]
    %v36 = vld [vmem:[%s1 + $0x10] sm:$0xff]
    %v37 = vld [vmem:[%s1 + $0x18] sm:$0xff]
    %39 = vset.pattern.permute.xlu0 0
    %40 = vperm.xlu0 %39, %v34
    %v41 = vpop.permute.xlu0 %40
    %44 = vset.pattern.permute.xlu0 0
    %45 = vperm.xlu0 %44, %v35
    %v46 = vpop.permute.xlu0 %45
    %49 = vset.pattern.permute.xlu0 0
    %50 = vperm.xlu0 %49, %v36
    %v51 = vpop.permute.xlu0 %50
    %54 = vset.pattern.permute.xlu0 0
    %55 = vperm.xlu0 %54, %v37
    %v56 = vpop.permute.xlu0 %55
    %v59 = vlaneseq
    %v60 = vshrl.u32 %v59, 7
    %v61 = vsub.s32 0, %v60
    %v62 = vrot.slane %v33, %v61
    %v63 = vlaneseq
    %v64 = vshrl.u32 %v63, 7
    %v65 = vsub.s32 1, %v64
    %v66 = vrot.slane %v33, %v65
    %v69 = vmul.f32 %v41, %v62
    %v70 = vmul.f32 %v41, %v66
    %v71 = vmul.f32 %v46, %v62
    %v72 = vmul.f32 %v46, %v66
    %v73 = vmul.f32 %v51, %v62
    %v74 = vmul.f32 %v51, %v66
    %v75 = vmul.f32 %v56, %v62
    %v76 = vmul.f32 %v56, %v66
    %v77 = vld [vmem:[%s2] sm:$0xff]
    %v78 = vld [vmem:[%s2 + $0x8] sm:$0xff]
    %v79 = vld [vmem:[%s2 + $0x10] sm:$0xff]
    %v80 = vld [vmem:[%s2 + $0x18] sm:$0xff]
    %82 = vset.pattern.permute.xlu0 0
    %83 = vperm.xlu0 %82, %v77
    %v84 = vpop.permute.xlu0 %83
    %87 = vset.pattern.permute.xlu0 0
    %88 = vperm.xlu0 %87, %v78
    %v89 = vpop.permute.xlu0 %88
    %92 = vset.pattern.permute.xlu0 0
    %93 = vperm.xlu0 %92, %v79
    %v94 = vpop.permute.xlu0 %93
    %97 = vset.pattern.permute.xlu0 0
    %98 = vperm.xlu0 %97, %v80
    %v99 = vpop.permute.xlu0 %98
    %v101 = vadd.f32 %v69, %v84
    %v102 = vadd.f32 %v70, %v84
    %v103 = vadd.f32 %v71, %v89
    %v104 = vadd.f32 %v72, %v89
    %v105 = vadd.f32 %v73, %v94
    %v106 = vadd.f32 %v74, %v94
    %v107 = vadd.f32 %v75, %v99
    %v108 = vadd.f32 %v76, %v99
    %v109 = vtanh.pop %v101
    %v110 = vtanh.pop %v102
    %v111 = vtanh.pop %v103
    %v112 = vtanh.pop %v104
    %v113 = vtanh.pop %v105
    %v114 = vtanh.pop %v106
    %v115 = vtanh.pop %v107
    %v116 = vtanh.pop %v108
    %v117 = vld [vmem:[%s3] sm:$0xff]
    %v118 = vld [vmem:[%s3 + $0x8] sm:$0xff]
    %v119 = vld [vmem:[%s3 + $0x10] sm:$0xff]
    %v120 = vld [vmem:[%s3 + $0x18] sm:$0xff]
    %v121 = vld [vmem:[%s4] sm:$0xff]
    %v122 = vld [vmem:[%s4 + $0x8] sm:$0xff]
    %v123 = vld [vmem:[%s4 + $0x10] sm:$0xff]
    %v124 = vld [vmem:[%s4 + $0x18] sm:$0xff]
    %126 = vset.pattern.permute.xlu0 0
    %127 = vperm.xlu0 %126, %v121
    %v128 = vpop.permute.xlu0 %127
    %131 = vset.pattern.permute.xlu0 0
    %132 = vperm.xlu0 %131, %v122
    %v133 = vpop.permute.xlu0 %132
    %136 = vset.pattern.permute.xlu0 0
    %137 = vperm.xlu0 %136, %v123
    %v138 = vpop.permute.xlu0 %137
    %141 = vset.pattern.permute.xlu0 0
    %142 = vperm.xlu0 %141, %v124
    %v143 = vpop.permute.xlu0 %142
    %vm145 = vcmask 261120
    %v147 = vsel %vm145, %v117, 0
    %v150 = vsel %vm145, %v118, 0
    %v153 = vsel %vm145, %v119, 0
    %v156 = vsel %vm145, %v120, 0
    %158 = vmatprep.subr.mxu0 %v110
    %159 = vmatpush1.msra.mxu0 %v109
    %160 = vmatprep.subr.mxu0 %v112
    %161 = vmatpush1.msra.mxu0 %v111
    %162 = vmatprep.subr.mxu0 %v114
    %163 = vmatpush1.msra.mxu0 %v113
    %164 = vmatprep.subr.mxu0 %v116
    %165 = vmatpush1.msra.mxu0 %v115
    %166 = vmatprep.subr.mxu0 0.0
    %167 = vmatpush1.msra.mxu0 0.0
    %168 = vmatprep.subr.mxu0 0.0
    %169 = vmatpush1.msra.mxu0 0.0
    %170 = vmatprep.subr.mxu0 0.0
    %171 = vmatpush1.msra.mxu0 0.0
    %172 = vmatprep.subr.mxu0 0.0
    %173 = vmatpush1.msra.mxu0 0.0
    %174 = vmatprep.subr.mxu0 0.0
    %175 = vmatpush1.msra.mxu0 0.0
    %176 = vmatprep.subr.mxu0 0.0
    %177 = vmatpush1.msra.mxu0 0.0
    %178 = vmatprep.subr.mxu0 0.0
    %179 = vmatpush1.msra.mxu0 0.0
    %180 = vmatprep.subr.mxu0 0.0
    %181 = vmatpush1.msra.mxu0 0.0
    %182 = vmatprep.subr.mxu0 0.0
    %183 = vmatpush1.msra.mxu0 0.0
    %184 = vmatprep.subr.mxu0 0.0
    %185 = vmatpush1.msra.mxu0 0.0
    %186 = vmatprep.subr.mxu0 0.0
    %187 = vmatpush1.msra.mxu0 0.0
    %188 = vmatprep.subr.mxu0 0.0
    %189 = vmatpush1.msra.mxu0 0.0
    %190 = vmatprep.subr.mxu0 0.0
    %191 = vmatpush1.msra.mxu0 0.0
    %192 = vmatprep.subr.mxu0 0.0
    %193 = vmatpush1.msra.mxu0 0.0
    %194 = vmatprep.subr.mxu0 0.0
    %195 = vmatpush1.msra.mxu0 0.0
    %196 = vmatprep.subr.mxu0 0.0
    %197 = vmatpush1.msra.mxu0 0.0
    %198 = vmatprep.subr.mxu0 0.0
    %199 = vmatpush1.msra.mxu0 0.0
    %200 = vmatprep.subr.mxu0 0.0
    %201 = vmatpush1.msra.mxu0 0.0
    %202 = vmatprep.subr.mxu0 0.0
    %203 = vmatpush1.msra.mxu0 0.0
    %204 = vmatprep.subr.mxu0 0.0
    %205 = vmatpush1.msra.mxu0 0.0
    %206 = vmatprep.subr.mxu0 0.0
    %207 = vmatpush1.msra.mxu0 0.0
    %208 = vmatprep.subr.mxu0 0.0
    %209 = vmatpush1.msra.mxu0 0.0
    %210 = vmatprep.subr.mxu0 0.0
    %211 = vmatpush1.msra.mxu0 0.0
    %212 = vmatprep.subr.mxu0 0.0
    %213 = vmatpush1.msra.mxu0 0.0
    %214 = vmatprep.subr.mxu0 0.0
    %215 = vmatpush1.msra.mxu0 0.0
    %216 = vmatprep.subr.mxu0 0.0
    %217 = vmatpush1.msra.mxu0 0.0
    %218 = vmatprep.subr.mxu0 0.0
    %219 = vmatpush1.msra.mxu0 0.0
    %220 = vmatprep.subr.mxu0 0.0
    %221 = vmatpush1.msra.mxu0 0.0
    %222 = vmatprep.mubr.f32.mxu0 0.0
    %223 = vmatmul.mubr.f32.gmra.mrb[0].mxu0 %v147
    %v224 = vpop.f32.mrb[0].mxu0
    %v225 = vadd.f32 %v128, %v224
    %v226 = vpop.f32.mrb[0].mxu0
    %v227 = vadd.f32 %v128, %v226
    %228 = vmatprep.mubr.f32.mxu0 0.0
    %229 = vmatmul.mubr.f32.gmra.mrb[0].mxu0 %v150
    %v230 = vpop.f32.mrb[0].mxu0
    %v231 = vadd.f32 %v133, %v230
    %v232 = vpop.f32.mrb[0].mxu0
    %v233 = vadd.f32 %v133, %v232
    %234 = vmatprep.mubr.f32.mxu0 0.0
    %235 = vmatmul.mubr.f32.gmra.mrb[0].mxu0 %v153
    %v236 = vpop.f32.mrb[0].mxu0
    %v237 = vadd.f32 %v138, %v236
    %v238 = vpop.f32.mrb[0].mxu0
    %v239 = vadd.f32 %v138, %v238
    %240 = vmatprep.mubr.f32.mxu0 0.0
    %241 = vmatmul.mubr.f32.gmra.mrb[0].mxu0 %v156
    %v242 = vpop.f32.mrb[0].mxu0
    %v243 = vadd.f32 %v143, %v242
    %v244 = vpop.f32.mrb[0].mxu0
    %v245 = vadd.f32 %v143, %v244
    %246 = vdwg.mxu0
    %v247 = vtanh.pop %v225
    %v248 = vtanh.pop %v227
    %v249 = vtanh.pop %v231
    %v250 = vtanh.pop %v233
    %v251 = vtanh.pop %v237
    %v252 = vtanh.pop %v239
    %v253 = vtanh.pop %v243
    %v254 = vtanh.pop %v245
    %v255 = vld [vmem:[%s5] sm:$0xff]
    %v256 = vld [vmem:[%s5 + $0x8] sm:$0xff]
    %v257 = vld [vmem:[%s5 + $0x10] sm:$0xff]
    %v258 = vld [vmem:[%s5 + $0x18] sm:$0xff]
    %v259 = vld [vmem:[%s6] sm:$0xff]
    %v260 = vld [vmem:[%s6 + $0x8] sm:$0xff]
    %v261 = vld [vmem:[%s6 + $0x10] sm:$0xff]
    %v262 = vld [vmem:[%s6 + $0x18] sm:$0xff]
    %264 = vset.pattern.permute.xlu0 0
    %265 = vperm.xlu0 %264, %v259
    %v266 = vpop.permute.xlu0 %265
    %269 = vset.pattern.permute.xlu0 0
    %270 = vperm.xlu0 %269, %v260
    %v271 = vpop.permute.xlu0 %270
    %274 = vset.pattern.permute.xlu0 0
    %275 = vperm.xlu0 %274, %v261
    %v276 = vpop.permute.xlu0 %275
    %279 = vset.pattern.permute.xlu0 0
    %280 = vperm.xlu0 %279, %v262
    %v281 = vpop.permute.xlu0 %280
    %v284 = vsel %vm145, %v255, 0
    %v287 = vsel %vm145, %v256, 0
    %v290 = vsel %vm145, %v257, 0
    %v293 = vsel %vm145, %v258, 0
    %295 = vmatprep.subr.mxu0 %v248
    %296 = vmatpush1.msra.mxu0 %v247
    %297 = vmatprep.subr.mxu0 %v250
    %298 = vmatpush1.msra.mxu0 %v249
    %299 = vmatprep.subr.mxu0 %v252
    %300 = vmatpush1.msra.mxu0 %v251
    %301 = vmatprep.subr.mxu0 %v254
    %302 = vmatpush1.msra.mxu0 %v253
    %303 = vmatprep.subr.mxu0 0.0
    %304 = vmatpush1.msra.mxu0 0.0
    %305 = vmatprep.subr.mxu0 0.0
    %306 = vmatpush1.msra.mxu0 0.0
    %307 = vmatprep.subr.mxu0 0.0
    %308 = vmatpush1.msra.mxu0 0.0
    %309 = vmatprep.subr.mxu0 0.0
    %310 = vmatpush1.msra.mxu0 0.0
    %311 = vmatprep.subr.mxu0 0.0
    %312 = vmatpush1.msra.mxu0 0.0
    %313 = vmatprep.subr.mxu0 0.0
    %314 = vmatpush1.msra.mxu0 0.0
    %315 = vmatprep.subr.mxu0 0.0
    %316 = vmatpush1.msra.mxu0 0.0
    %317 = vmatprep.subr.mxu0 0.0
    %318 = vmatpush1.msra.mxu0 0.0
    %319 = vmatprep.subr.mxu0 0.0
    %320 = vmatpush1.msra.mxu0 0.0
    %321 = vmatprep.subr.mxu0 0.0
    %322 = vmatpush1.msra.mxu0 0.0
    %323 = vmatprep.subr.mxu0 0.0
    %324 = vmatpush1.msra.mxu0 0.0
    %325 = vmatprep.subr.mxu0 0.0
    %326 = vmatpush1.msra.mxu0 0.0
    %327 = vmatprep.subr.mxu0 0.0
    %328 = vmatpush1.msra.mxu0 0.0
    %329 = vmatprep.subr.mxu0 0.0
    %330 = vmatpush1.msra.mxu0 0.0
    %331 = vmatprep.subr.mxu0 0.0
    %332 = vmatpush1.msra.mxu0 0.0
    %333 = vmatprep.subr.mxu0 0.0
    %334 = vmatpush1.msra.mxu0 0.0
    %335 = vmatprep.subr.mxu0 0.0
    %336 = vmatpush1.msra.mxu0 0.0
    %337 = vmatprep.subr.mxu0 0.0
    %338 = vmatpush1.msra.mxu0 0.0
    %339 = vmatprep.subr.mxu0 0.0
    %340 = vmatpush1.msra.mxu0 0.0
    %341 = vmatprep.subr.mxu0 0.0
    %342 = vmatpush1.msra.mxu0 0.0
    %343 = vmatprep.subr.mxu0 0.0
    %344 = vmatpush1.msra.mxu0 0.0
    %345 = vmatprep.subr.mxu0 0.0
    %346 = vmatpush1.msra.mxu0 0.0
    %347 = vmatprep.subr.mxu0 0.0
    %348 = vmatpush1.msra.mxu0 0.0
    %349 = vmatprep.subr.mxu0 0.0
    %350 = vmatpush1.msra.mxu0 0.0
    %351 = vmatprep.subr.mxu0 0.0
    %352 = vmatpush1.msra.mxu0 0.0
    %353 = vmatprep.subr.mxu0 0.0
    %354 = vmatpush1.msra.mxu0 0.0
    %355 = vmatprep.subr.mxu0 0.0
    %356 = vmatpush1.msra.mxu0 0.0
    %357 = vmatprep.subr.mxu0 0.0
    %358 = vmatpush1.msra.mxu0 0.0
    %359 = vmatprep.mubr.f32.mxu0 0.0
    %360 = vmatmul.mubr.f32.gmra.mrb[0].mxu0 %v284
    %v361 = vpop.f32.mrb[0].mxu0
    %v362 = vadd.f32 %v266, %v361
    %v363 = vpop.f32.mrb[0].mxu0
    %v364 = vadd.f32 %v266, %v363
    %365 = vmatprep.mubr.f32.mxu0 0.0
    %366 = vmatmul.mubr.f32.gmra.mrb[0].mxu0 %v287
    %v367 = vpop.f32.mrb[0].mxu0
    %v368 = vadd.f32 %v271, %v367
    %v369 = vpop.f32.mrb[0].mxu0
    %v370 = vadd.f32 %v271, %v369
    %371 = vmatprep.mubr.f32.mxu0 0.0
    %372 = vmatmul.mubr.f32.gmra.mrb[0].mxu0 %v290
    %v373 = vpop.f32.mrb[0].mxu0
    %v374 = vadd.f32 %v276, %v373
    %v375 = vpop.f32.mrb[0].mxu0
    %v376 = vadd.f32 %v276, %v375
    %377 = vmatprep.mubr.f32.mxu0 0.0
    %378 = vmatmul.mubr.f32.gmra.mrb[0].mxu0 %v293
    %v379 = vpop.f32.mrb[0].mxu0
    %v380 = vadd.f32 %v281, %v379
    %v381 = vpop.f32.mrb[0].mxu0
    %v382 = vadd.f32 %v281, %v381
    %383 = vdwg.mxu0
    %v384 = vtanh.pop %v362
    %v385 = vtanh.pop %v364
    %v386 = vtanh.pop %v368
    %v387 = vtanh.pop %v370
    %v388 = vtanh.pop %v374
    %v389 = vtanh.pop %v376
    %v390 = vtanh.pop %v380
    %v391 = vtanh.pop %v382
    %v392 = vld [vmem:[%s7] sm:$0x3f]
    %v393 = vld [vmem:[%s8] sm:$0x3f]
    %395 = vset.pattern.permute.xlu0 0
    %396 = vperm.xlu0 %395, %v393
    %v397 = vpop.permute.xlu0 %396
    %v400 = vsel %vm145, %v392, 0
    %402 = vmatprep.subr.mxu0 %v385
    %403 = vmatpush1.msra.mxu0 %v384
    %404 = vmatprep.subr.mxu0 %v387
    %405 = vmatpush1.msra.mxu0 %v386
    %406 = vmatprep.subr.mxu0 %v389
    %407 = vmatpush1.msra.mxu0 %v388
    %408 = vmatprep.subr.mxu0 %v391
    %409 = vmatpush1.msra.mxu0 %v390
    %410 = vmatprep.subr.mxu0 0.0
    %411 = vmatpush1.msra.mxu0 0.0
    %412 = vmatprep.subr.mxu0 0.0
    %413 = vmatpush1.msra.mxu0 0.0
    %414 = vmatprep.subr.mxu0 0.0
    %415 = vmatpush1.msra.mxu0 0.0
    %416 = vmatprep.subr.mxu0 0.0
    %417 = vmatpush1.msra.mxu0 0.0
    %418 = vmatprep.subr.mxu0 0.0
    %419 = vmatpush1.msra.mxu0 0.0
    %420 = vmatprep.subr.mxu0 0.0
    %421 = vmatpush1.msra.mxu0 0.0
    %422 = vmatprep.subr.mxu0 0.0
    %423 = vmatpush1.msra.mxu0 0.0
    %424 = vmatprep.subr.mxu0 0.0
    %425 = vmatpush1.msra.mxu0 0.0
    %426 = vmatprep.subr.mxu0 0.0
    %427 = vmatpush1.msra.mxu0 0.0
    %428 = vmatprep.subr.mxu0 0.0
    %429 = vmatpush1.msra.mxu0 0.0
    %430 = vmatprep.subr.mxu0 0.0
    %431 = vmatpush1.msra.mxu0 0.0
    %432 = vmatprep.subr.mxu0 0.0
    %433 = vmatpush1.msra.mxu0 0.0
    %434 = vmatprep.subr.mxu0 0.0
    %435 = vmatpush1.msra.mxu0 0.0
    %436 = vmatprep.subr.mxu0 0.0
    %437 = vmatpush1.msra.mxu0 0.0
    %438 = vmatprep.subr.mxu0 0.0
    %439 = vmatpush1.msra.mxu0 0.0
    %440 = vmatprep.subr.mxu0 0.0
    %441 = vmatpush1.msra.mxu0 0.0
    %442 = vmatprep.subr.mxu0 0.0
    %443 = vmatpush1.msra.mxu0 0.0
    %444 = vmatprep.subr.mxu0 0.0
    %445 = vmatpush1.msra.mxu0 0.0
    %446 = vmatprep.subr.mxu0 0.0
    %447 = vmatpush1.msra.mxu0 0.0
    %448 = vmatprep.subr.mxu0 0.0
    %449 = vmatpush1.msra.mxu0 0.0
    %450 = vmatprep.subr.mxu0 0.0
    %451 = vmatpush1.msra.mxu0 0.0
    %452 = vmatprep.subr.mxu0 0.0
    %453 = vmatpush1.msra.mxu0 0.0
    %454 = vmatprep.subr.mxu0 0.0
    %455 = vmatpush1.msra.mxu0 0.0
    %456 = vmatprep.subr.mxu0 0.0
    %457 = vmatpush1.msra.mxu0 0.0
    %458 = vmatprep.subr.mxu0 0.0
    %459 = vmatpush1.msra.mxu0 0.0
    %460 = vmatprep.subr.mxu0 0.0
    %461 = vmatpush1.msra.mxu0 0.0
    %462 = vmatprep.subr.mxu0 0.0
    %463 = vmatpush1.msra.mxu0 0.0
    %464 = vmatprep.subr.mxu0 0.0
    %465 = vmatpush1.msra.mxu0 0.0
    %466 = vmatprep.mubr.f32.mxu0 0.0
    %467 = vmatmul.mubr.f32.gmra.mrb[0].mxu0 %v400
    %v468 = vpop.f32.mrb[0].mxu0
    %v469 = vadd.f32 %v397, %v468
    %v470 = vpop.f32.mrb[0].mxu0
    %v471 = vadd.f32 %v397, %v470
    %472 = vdwg.mxu0
    %473 = vst [vmem:[#allocation2] sm:$0x3f] %v469
    %474 = vst [vmem:[#allocation2 + $0x8] sm:$0x3f] %v471
    // Predicated region
    $region38: #{tpu_custom_call.1} parent=1 // pred_check
      _
    $region39: #{tpu_custom_call.1} parent=1 // pred_check_branch
      %476 = sbr.rel (0) target = $region41
    $region40: #{tpu_custom_call.1} parent=1 // pred_region
      %s478 = ssub.s32 256, 256
      %479 = vsyncadd [#allocation3], %s478
      %s481 = sshll.u32 [#allocation2], 4
      %s482 = int_to_ptr.vmem [resolvable:$true] %s481
      %484 = dma.vmem_to_hbm [thread:$0]  %s482, 256, %s9, [#allocation3]
    $region41: #{tpu_custom_call.1} parent=1 // pred_fallthru
      _
    // Predicated region
    $region42: #{tpu_custom_call.1} parent=1 // pred_check
      _
    $region43: #{tpu_custom_call.1} parent=1 // pred_check_branch
      %486 = sbr.rel (0) target = $region45
    $region44: #{tpu_custom_call.1} parent=1 // pred_region
      %487 = dma.done [#allocation3], 256
    $region45: #{tpu_custom_call.1} parent=1 // pred_fallthru
      _
    %488 = vsyncpa [#allocation3], 1

</llo_original>
